<compile_context>
chip_gen: v7x
topology: tpu7x:2x2x1
jax: 0.10.0
libtpu: 0.0.40
codegen_flags: <defaults>
</compile_context>

<pallas_src>
import jax
import jax.numpy as jnp
from jax.experimental import pallas as pl
from jax.experimental.pallas import tpu as pltpu


def decoder_kernel(ids_ref,            # SMEM int32 [B]                  token ids
                   tab_ref,            # VMEM f32   [V, 1, E]            embedding table
                   w0_ref, b0_ref,     # VMEM f32   [3, E, H], [3, 1, H] layer-0 (i, g, o) input weights/bias
                   w1_ref, b1_ref,     # VMEM f32   [3, H, H], [3, 1, H] layer-1 (i, g, o) input weights/bias
                   wfc_ref, bfc_ref,   # VMEM f32   [H, O], [1, O]       final linear
                   pred_ref,           # VMEM f32   [B, O]               prediction (squeeze(0) applied)
                   packed_ref,         # VMEM f32   [B, 4H] = h0|h1|c0|c1 (lane-dense packed state)
                   emb_scr):           # VMEM f32   [B, E] scratch
    B = emb_scr.shape[0]
    H = w0_ref.shape[2]

    # Fused embedding gather (dropout is identity in eval): one dynamically indexed
    # row load per token from the VMEM-resident table.
    for b in range(B):                                  # B is small; static unroll
        emb_scr[pl.ds(b, 1), :] = tab_ref[ids_ref[b]]   # [1, E]

    emb = emb_scr[...]                                  # [B, E]

    def lstm_step_zero_state(x, w_ref, b_ref):
        # Single LSTM step with h_prev = c_prev = 0:
        #   - the recurrent term h_prev @ W_hh is identically zero      -> elided (no W_hh at all)
        #   - the forget gate multiplies c_prev = 0                     -> elided (c = i * g)
        # Per-gate narrow matmuls avoid sub-128-lane slicing of a wide gate matrix.
        zi = jnp.dot(x, w_ref[0], preferred_element_type=jnp.float32) + b_ref[0]
        zg = jnp.dot(x, w_ref[1], preferred_element_type=jnp.float32) + b_ref[1]
        zo = jnp.dot(x, w_ref[2], preferred_element_type=jnp.float32) + b_ref[2]
        c = jax.nn.sigmoid(zi) * jnp.tanh(zg)
        h = jax.nn.sigmoid(zo) * jnp.tanh(c)
        return h, c

    h0, c0 = lstm_step_zero_state(emb, w0_ref, b0_ref)   # layer 0
    h1, c1 = lstm_step_zero_state(h0, w1_ref, b1_ref)    # layer 1 (inter-layer dropout: identity)

    # Final linear layer on the last layer's output (seq_len == 1).
    pred_ref[...] = jnp.dot(h1, wfc_ref[...], preferred_element_type=jnp.float32) + bfc_ref[...]

    # Single lane-dense [B, 4H] store instead of four narrow masked stores.
    packed_ref[...] = jnp.concatenate([h0, h1, c0, c1], axis=1)


def make_decoder_params(key, input_size, embedding_size, hidden_size, output_size):
    """Deterministic synthetic parameters with PyTorch-like shapes/init (full i,f,g,o + W_hh)."""
    ks = jax.random.split(key, 12)
    H, E, O = hidden_size, embedding_size, output_size
    s = 1.0 / jnp.sqrt(jnp.float32(H))

    def u(k, shape):
        return jax.random.uniform(k, shape, jnp.float32, -s, s)

    return {
        "embedding": jax.random.normal(ks[0], (input_size, E), jnp.float32),
        # LSTM layer 0 (input E)
        "w_ih0": u(ks[1], (4 * H, E)),
        "w_hh0": u(ks[2], (4 * H, H)),
        "b_ih0": u(ks[3], (4 * H,)),
        "b_hh0": u(ks[4], (4 * H,)),
        # LSTM layer 1 (input H)
        "w_ih1": u(ks[5], (4 * H, H)),
        "w_hh1": u(ks[6], (4 * H, H)),
        "b_ih1": u(ks[7], (4 * H,)),
        "b_hh1": u(ks[8], (4 * H,)),
        # fc
        "w_fc": u(ks[9], (O, H)),
        "b_fc": u(ks[10], (O,)),
    }


def prepare_decoder_params(params):
    """One-time parameter prep (hoisted out of the per-call path).

    Transposes the PyTorch [4H, in] input weights, sums b_ih + b_hh, splits out only the live
    gates (i, g, o; PyTorch order is i, f, g, o and f is dead for zero-init state), and drops
    W_hh entirely (multiplied by h_prev = 0). The embedding table is reshaped to [V, 1, E] so
    the kernel can gather rows with dynamic leading-dim indexing.
    """
    H = params["w_ih0"].shape[0] // 4

    def split(w_ih, b_ih, b_hh):
        w = w_ih.T                                      # [in, 4H]
        b = (b_ih + b_hh).reshape(1, 4 * H)
        w3 = jnp.stack([w[:, 0:H], w[:, 2 * H:3 * H], w[:, 3 * H:4 * H]])    # [3, in, H] (i, g, o)
        b3 = jnp.stack([b[:, 0:H], b[:, 2 * H:3 * H], b[:, 3 * H:4 * H]])    # [3, 1, H]
        return w3, b3

    w0, b0 = split(params["w_ih0"], params["b_ih0"], params["b_hh0"])
    w1, b1 = split(params["w_ih1"], params["b_ih1"], params["b_hh1"])
    # TODO(synk): for a production-sized vocab keep the table 2D in HBM (pl.ANY) and DMA-gather
    # rows instead of holding a tile-padded [V,1,E] copy in VMEM (fine for this small demo vocab).
    emb_tab = params["embedding"].astype(jnp.float32)[:, None, :]            # [V, 1, E]
    return {
        "emb_tab": emb_tab,
        "w0": w0, "b0": b0,
        "w1": w1, "b1": b1,
        "wfc": params["w_fc"].T,                        # [H, O]
        "bfc": params["b_fc"].reshape(1, -1),           # [1, O]
    }


@jax.jit
def decoder_forward(prep, x, hidden, cell):
    """x: int32 [B] token ids. (hidden, cell) are accepted but ignored, matching the PyTorch forward."""
    del hidden, cell            # PyTorch forward calls self.rnn(embedding) with no initial state
    B = x.shape[0]
    H = prep["w0"].shape[2]
    E = prep["emb_tab"].shape[2]
    O = prep["wfc"].shape[1]
    num_layers = 2

    smem = pl.BlockSpec(memory_space=pltpu.MemorySpace.SMEM)
    vmem = pl.BlockSpec(memory_space=pltpu.MemorySpace.VMEM)

    pred, packed = pl.pallas_call(
        decoder_kernel,
        out_shape=(
            jax.ShapeDtypeStruct((B, O), jnp.float32),          # prediction
            jax.ShapeDtypeStruct((B, 4 * H), jnp.float32),      # h0 | h1 | c0 | c1 (lane-dense)
        ),
        in_specs=[smem, vmem, vmem, vmem, vmem, vmem, vmem, vmem],
        out_specs=(vmem, vmem),
        scratch_shapes=[pltpu.VMEM((B, E), jnp.float32)],
    )(x.astype(jnp.int32), prep["emb_tab"],
      prep["w0"], prep["b0"], prep["w1"], prep["b1"],
      prep["wfc"], prep["bfc"])

    hidden_out = jnp.stack([packed[:, 0:H], packed[:, H:2 * H]])            # [2, B, H]
    cell_out = jnp.stack([packed[:, 2 * H:3 * H], packed[:, 3 * H:4 * H]])  # [2, B, H]
    assert hidden_out.shape[0] == num_layers
    return pred, hidden_out, cell_out


def _reference_forward(params, x, hidden_size):
    """Plain-JAX reference: faithful single-step 2-layer LSTM decoder with zero init state."""
    H = hidden_size
    emb = jnp.take(params["embedding"], x, axis=0).astype(jnp.float32)      # [B, E]
    B = emb.shape[0]
    zeros = jnp.zeros((B, H), jnp.float32)

    def cell(xin, h_prev, c_prev, w_ih, w_hh, b_ih, b_hh):
        gates = xin @ w_ih.T + h_prev @ w_hh.T + b_ih + b_hh
        i = jax.nn.sigmoid(gates[:, 0 * H:1 * H])
        f = jax.nn.sigmoid(gates[:, 1 * H:2 * H])
        g = jnp.tanh(gates[:, 2 * H:3 * H])
        o = jax.nn.sigmoid(gates[:, 3 * H:4 * H])
        c = f * c_prev + i * g
        h = o * jnp.tanh(c)
        return h, c

    h0, c0 = cell(emb, zeros, zeros, params["w_ih0"], params["w_hh0"], params["b_ih0"], params["b_hh0"])
    h1, c1 = cell(h0, zeros, zeros, params["w_ih1"], params["w_hh1"], params["b_ih1"], params["b_hh1"])
    pred = h1 @ params["w_fc"].T + params["b_fc"]
    return pred, jnp.stack([h0, h1]), jnp.stack([c0, c1])


if __name__ == "__main__":
    # Small shapes consistent with the module's forward.
    B = 8            # batch (sublane-friendly)
    INPUT_SIZE = 50  # target vocab size (embedding rows)
    E = 32           # embedding_size
    H = 32           # hidden_size  (4H = 128 -> lane-dense packed state output)
    O = 128          # output_size  (lane-dense prediction)
    NUM_LAYERS = 2
    P = 0.1          # dropout prob (inactive at inference)

    key = jax.random.PRNGKey(0)
    kp, kx = jax.random.split(key)
    params = make_decoder_params(kp, INPUT_SIZE, E, H, O)
    prep = prepare_decoder_params(params)

    x = jax.random.randint(kx, (B,), 0, INPUT_SIZE, dtype=jnp.int32)
    # Accepted (to match the PyTorch signature) but ignored by the forward, exactly like the module.
    hidden_in = jnp.zeros((NUM_LAYERS, B, H), jnp.float32)
    cell_in = jnp.zeros((NUM_LAYERS, B, H), jnp.float32)

    pred, hidden, cell = decoder_forward(prep, x, hidden_in, cell_in)
    jax.block_until_ready((pred, hidden, cell))

    # Sanity check against a plain-JAX reference (full PyTorch-style gate math with zero state).
    ref_pred, ref_hid, ref_cell = _reference_forward(params, x, H)
    assert pred.shape == (B, O)
    assert hidden.shape == (NUM_LAYERS, B, H)
    assert cell.shape == (NUM_LAYERS, B, H)
    assert jnp.allclose(pred, ref_pred, atol=1e-4, rtol=1e-4)
    assert jnp.allclose(hidden, ref_hid, atol=1e-4, rtol=1e-4)
    assert jnp.allclose(cell, ref_cell, atol=1e-4, rtol=1e-4)

    print("KERNEL_OK")
</pallas_src>

<mosaic_0001>
module attributes {stable_mosaic.version = 11 : i64} {
  func.func @decoder_kernel(%arg0: memref<8xi32, #tpu.memory_space<smem>>, %arg1: memref<50x1x32xf32, #tpu.memory_space<vmem>>, %arg2: memref<3x32x32xf32, #tpu.memory_space<vmem>>, %arg3: memref<3x1x32xf32, #tpu.memory_space<vmem>>, %arg4: memref<3x32x32xf32, #tpu.memory_space<vmem>>, %arg5: memref<3x1x32xf32, #tpu.memory_space<vmem>>, %arg6: memref<32x128xf32, #tpu.memory_space<vmem>>, %arg7: memref<1x128xf32, #tpu.memory_space<vmem>>, %arg8: memref<8x128xf32, #tpu.memory_space<vmem>>, %arg9: memref<8x128xf32, #tpu.memory_space<vmem>>, %arg10: memref<8x32xf32, #tpu.memory_space<vmem>>) attributes {dimension_semantics = [], scalar_prefetch = 0 : i64, scratch_operands = 1 : i64, tpu.core_type = #tpu.core_type<tc>} {
    %c0 = arith.constant 0 : index
    %0 = memref.load %arg0[%c0] : memref<8xi32, #tpu.memory_space<smem>>
    %1 = arith.index_cast %0 : i32 to index
    %c0_0 = arith.constant 0 : index
    %c0_1 = arith.constant 0 : index
    %2 = vector.load %arg1[%1, %c0_0, %c0_1] : memref<50x1x32xf32, #tpu.memory_space<vmem>>, vector<1x1x32xf32>
    %3 = vector.shape_cast %2 : vector<1x1x32xf32> to vector<1x32xf32>
    %c0_2 = arith.constant 0 : index
    %c0_3 = arith.constant 0 : index
    %4 = vector.load %arg10[%c0_2, %c0_3] : memref<8x32xf32, #tpu.memory_space<vmem>>, vector<1x32xf32>
    tpu.vector_store %arg10[%c0_2, %c0_3], %3 {strides = array<i32>} : memref<8x32xf32, #tpu.memory_space<vmem>>, vector<1x32xf32>,
    %c1 = arith.constant 1 : index
    %5 = memref.load %arg0[%c1] : memref<8xi32, #tpu.memory_space<smem>>
    %6 = arith.index_cast %5 : i32 to index
    %c0_4 = arith.constant 0 : index
    %c0_5 = arith.constant 0 : index
    %7 = vector.load %arg1[%6, %c0_4, %c0_5] : memref<50x1x32xf32, #tpu.memory_space<vmem>>, vector<1x1x32xf32>
    %8 = vector.shape_cast %7 : vector<1x1x32xf32> to vector<1x32xf32>
    %c1_6 = arith.constant 1 : index
    %c0_7 = arith.constant 0 : index
    %9 = vector.load %arg10[%c1_6, %c0_7] : memref<8x32xf32, #tpu.memory_space<vmem>>, vector<1x32xf32>
    tpu.vector_store %arg10[%c1_6, %c0_7], %8 {strides = array<i32>} : memref<8x32xf32, #tpu.memory_space<vmem>>, vector<1x32xf32>,
    %c2 = arith.constant 2 : index
    %10 = memref.load %arg0[%c2] : memref<8xi32, #tpu.memory_space<smem>>
    %11 = arith.index_cast %10 : i32 to index
    %c0_8 = arith.constant 0 : index
    %c0_9 = arith.constant 0 : index
    %12 = vector.load %arg1[%11, %c0_8, %c0_9] : memref<50x1x32xf32, #tpu.memory_space<vmem>>, vector<1x1x32xf32>
    %13 = vector.shape_cast %12 : vector<1x1x32xf32> to vector<1x32xf32>
    %c2_10 = arith.constant 2 : index
    %c0_11 = arith.constant 0 : index
    %14 = vector.load %arg10[%c2_10, %c0_11] : memref<8x32xf32, #tpu.memory_space<vmem>>, vector<1x32xf32>
    tpu.vector_store %arg10[%c2_10, %c0_11], %13 {strides = array<i32>} : memref<8x32xf32, #tpu.memory_space<vmem>>, vector<1x32xf32>,
    %c3 = arith.constant 3 : index
    %15 = memref.load %arg0[%c3] : memref<8xi32, #tpu.memory_space<smem>>
    %16 = arith.index_cast %15 : i32 to index
    %c0_12 = arith.constant 0 : index
    %c0_13 = arith.constant 0 : index
    %17 = vector.load %arg1[%16, %c0_12, %c0_13] : memref<50x1x32xf32, #tpu.memory_space<vmem>>, vector<1x1x32xf32>
    %18 = vector.shape_cast %17 : vector<1x1x32xf32> to vector<1x32xf32>
    %c3_14 = arith.constant 3 : index
    %c0_15 = arith.constant 0 : index
    %19 = vector.load %arg10[%c3_14, %c0_15] : memref<8x32xf32, #tpu.memory_space<vmem>>, vector<1x32xf32>
    tpu.vector_store %arg10[%c3_14, %c0_15], %18 {strides = array<i32>} : memref<8x32xf32, #tpu.memory_space<vmem>>, vector<1x32xf32>,
    %c4 = arith.constant 4 : index
    %20 = memref.load %arg0[%c4] : memref<8xi32, #tpu.memory_space<smem>>
    %21 = arith.index_cast %20 : i32 to index
    %c0_16 = arith.constant 0 : index
    %c0_17 = arith.constant 0 : index
    %22 = vector.load %arg1[%21, %c0_16, %c0_17] : memref<50x1x32xf32, #tpu.memory_space<vmem>>, vector<1x1x32xf32>
    %23 = vector.shape_cast %22 : vector<1x1x32xf32> to vector<1x32xf32>
    %c4_18 = arith.constant 4 : index
    %c0_19 = arith.constant 0 : index
    %24 = vector.load %arg10[%c4_18, %c0_19] : memref<8x32xf32, #tpu.memory_space<vmem>>, vector<1x32xf32>
    tpu.vector_store %arg10[%c4_18, %c0_19], %23 {strides = array<i32>} : memref<8x32xf32, #tpu.memory_space<vmem>>, vector<1x32xf32>,
    %c5 = arith.constant 5 : index
    %25 = memref.load %arg0[%c5] : memref<8xi32, #tpu.memory_space<smem>>
    %26 = arith.index_cast %25 : i32 to index
    %c0_20 = arith.constant 0 : index
    %c0_21 = arith.constant 0 : index
    %27 = vector.load %arg1[%26, %c0_20, %c0_21] : memref<50x1x32xf32, #tpu.memory_space<vmem>>, vector<1x1x32xf32>
    %28 = vector.shape_cast %27 : vector<1x1x32xf32> to vector<1x32xf32>
    %c5_22 = arith.constant 5 : index
    %c0_23 = arith.constant 0 : index
    %29 = vector.load %arg10[%c5_22, %c0_23] : memref<8x32xf32, #tpu.memory_space<vmem>>, vector<1x32xf32>
    tpu.vector_store %arg10[%c5_22, %c0_23], %28 {strides = array<i32>} : memref<8x32xf32, #tpu.memory_space<vmem>>, vector<1x32xf32>,
    %c6 = arith.constant 6 : index
    %30 = memref.load %arg0[%c6] : memref<8xi32, #tpu.memory_space<smem>>
    %31 = arith.index_cast %30 : i32 to index
    %c0_24 = arith.constant 0 : index
    %c0_25 = arith.constant 0 : index
    %32 = vector.load %arg1[%31, %c0_24, %c0_25] : memref<50x1x32xf32, #tpu.memory_space<vmem>>, vector<1x1x32xf32>
    %33 = vector.shape_cast %32 : vector<1x1x32xf32> to vector<1x32xf32>
    %c6_26 = arith.constant 6 : index
    %c0_27 = arith.constant 0 : index
    %34 = vector.load %arg10[%c6_26, %c0_27] : memref<8x32xf32, #tpu.memory_space<vmem>>, vector<1x32xf32>
    tpu.vector_store %arg10[%c6_26, %c0_27], %33 {strides = array<i32>} : memref<8x32xf32, #tpu.memory_space<vmem>>, vector<1x32xf32>,
    %c7 = arith.constant 7 : index
    %35 = memref.load %arg0[%c7] : memref<8xi32, #tpu.memory_space<smem>>
    %36 = arith.index_cast %35 : i32 to index
    %c0_28 = arith.constant 0 : index
    %c0_29 = arith.constant 0 : index
    %37 = vector.load %arg1[%36, %c0_28, %c0_29] : memref<50x1x32xf32, #tpu.memory_space<vmem>>, vector<1x1x32xf32>
    %38 = vector.shape_cast %37 : vector<1x1x32xf32> to vector<1x32xf32>
    %c7_30 = arith.constant 7 : index
    %c0_31 = arith.constant 0 : index
    %39 = vector.load %arg10[%c7_30, %c0_31] : memref<8x32xf32, #tpu.memory_space<vmem>>, vector<1x32xf32>
    tpu.vector_store %arg10[%c7_30, %c0_31], %38 {strides = array<i32>} : memref<8x32xf32, #tpu.memory_space<vmem>>, vector<1x32xf32>,
    %c0_32 = arith.constant 0 : index
    %c0_33 = arith.constant 0 : index
    %40 = vector.load %arg10[%c0_32, %c0_33] : memref<8x32xf32, #tpu.memory_space<vmem>>, vector<8x32xf32>
    %c0_34 = arith.constant 0 : index
    %c0_35 = arith.constant 0 : index
    %c0_36 = arith.constant 0 : index
    %41 = vector.load %arg2[%c0_34, %c0_35, %c0_36] : memref<3x32x32xf32, #tpu.memory_space<vmem>>, vector<1x32x32xf32>
    %42 = vector.shape_cast %41 : vector<1x32x32xf32> to vector<32x32xf32>
    %cst = arith.constant dense<0.000000e+00> : vector<8x32xf32>
    %43 = tpu.matmul %40, %42, %cst {dimension_numbers = #tpu.dot_dimension_numbers<[1], [0], [0], [1], [0, 0, 1, 1], [], []>} : vector<8x32xf32>, vector<32x32xf32>, vector<8x32xf32> -> vector<8x32xf32>
    %c0_37 = arith.constant 0 : index
    %c0_38 = arith.constant 0 : index
    %c0_39 = arith.constant 0 : index
    %44 = vector.load %arg3[%c0_37, %c0_38, %c0_39] : memref<3x1x32xf32, #tpu.memory_space<vmem>>, vector<1x1x32xf32>
    %45 = vector.shape_cast %44 : vector<1x1x32xf32> to vector<1x32xf32>
    %46 = vector.broadcast %45 : vector<1x32xf32> to vector<8x32xf32>
    %47 = arith.addf %43, %46 : vector<8x32xf32>
    %c1_40 = arith.constant 1 : index
    %c0_41 = arith.constant 0 : index
    %c0_42 = arith.constant 0 : index
    %48 = vector.load %arg2[%c1_40, %c0_41, %c0_42] : memref<3x32x32xf32, #tpu.memory_space<vmem>>, vector<1x32x32xf32>
    %49 = vector.shape_cast %48 : vector<1x32x32xf32> to vector<32x32xf32>
    %cst_43 = arith.constant dense<0.000000e+00> : vector<8x32xf32>
    %50 = tpu.matmul %40, %49, %cst_43 {dimension_numbers = #tpu.dot_dimension_numbers<[1], [0], [0], [1], [0, 0, 1, 1], [], []>} : vector<8x32xf32>, vector<32x32xf32>, vector<8x32xf32> -> vector<8x32xf32>
    %c1_44 = arith.constant 1 : index
    %c0_45 = arith.constant 0 : index
    %c0_46 = arith.constant 0 : index
    %51 = vector.load %arg3[%c1_44, %c0_45, %c0_46] : memref<3x1x32xf32, #tpu.memory_space<vmem>>, vector<1x1x32xf32>
    %52 = vector.shape_cast %51 : vector<1x1x32xf32> to vector<1x32xf32>
    %53 = vector.broadcast %52 : vector<1x32xf32> to vector<8x32xf32>
    %54 = arith.addf %50, %53 : vector<8x32xf32>
    %c2_47 = arith.constant 2 : index
    %c0_48 = arith.constant 0 : index
    %c0_49 = arith.constant 0 : index
    %55 = vector.load %arg2[%c2_47, %c0_48, %c0_49] : memref<3x32x32xf32, #tpu.memory_space<vmem>>, vector<1x32x32xf32>
    %56 = vector.shape_cast %55 : vector<1x32x32xf32> to vector<32x32xf32>
    %cst_50 = arith.constant dense<0.000000e+00> : vector<8x32xf32>
    %57 = tpu.matmul %40, %56, %cst_50 {dimension_numbers = #tpu.dot_dimension_numbers<[1], [0], [0], [1], [0, 0, 1, 1], [], []>} : vector<8x32xf32>, vector<32x32xf32>, vector<8x32xf32> -> vector<8x32xf32>
    %c2_51 = arith.constant 2 : index
    %c0_52 = arith.constant 0 : index
    %c0_53 = arith.constant 0 : index
    %58 = vector.load %arg3[%c2_51, %c0_52, %c0_53] : memref<3x1x32xf32, #tpu.memory_space<vmem>>, vector<1x1x32xf32>
    %59 = vector.shape_cast %58 : vector<1x1x32xf32> to vector<1x32xf32>
    %60 = vector.broadcast %59 : vector<1x32xf32> to vector<8x32xf32>
    %61 = arith.addf %57, %60 : vector<8x32xf32>
    %62 = arith.negf %47 : vector<8x32xf32>
    %63 = math.exp %62 : vector<8x32xf32>
    %cst_54 = arith.constant 1.000000e+00 : f32
    %64 = vector.broadcast %cst_54 : f32 to vector<8x32xf32>
    %65 = arith.addf %64, %63 : vector<8x32xf32>
    %66 = arith.divf %64, %65 : vector<8x32xf32>
    %67 = math.tanh %54 : vector<8x32xf32>
    %68 = arith.mulf %66, %67 : vector<8x32xf32>
    %69 = arith.negf %61 : vector<8x32xf32>
    %70 = math.exp %69 : vector<8x32xf32>
    %cst_55 = arith.constant 1.000000e+00 : f32
    %71 = vector.broadcast %cst_55 : f32 to vector<8x32xf32>
    %72 = arith.addf %71, %70 : vector<8x32xf32>
    %73 = arith.divf %71, %72 : vector<8x32xf32>
    %74 = math.tanh %68 : vector<8x32xf32>
    %75 = arith.mulf %73, %74 : vector<8x32xf32>
    %c0_56 = arith.constant 0 : index
    %c0_57 = arith.constant 0 : index
    %c0_58 = arith.constant 0 : index
    %76 = vector.load %arg4[%c0_56, %c0_57, %c0_58] : memref<3x32x32xf32, #tpu.memory_space<vmem>>, vector<1x32x32xf32>
    %77 = vector.shape_cast %76 : vector<1x32x32xf32> to vector<32x32xf32>
    %cst_59 = arith.constant dense<0.000000e+00> : vector<8x32xf32>
    %78 = tpu.matmul %75, %77, %cst_59 {dimension_numbers = #tpu.dot_dimension_numbers<[1], [0], [0], [1], [0, 0, 1, 1], [], []>} : vector<8x32xf32>, vector<32x32xf32>, vector<8x32xf32> -> vector<8x32xf32>
    %c0_60 = arith.constant 0 : index
    %c0_61 = arith.constant 0 : index
    %c0_62 = arith.constant 0 : index
    %79 = vector.load %arg5[%c0_60, %c0_61, %c0_62] : memref<3x1x32xf32, #tpu.memory_space<vmem>>, vector<1x1x32xf32>
    %80 = vector.shape_cast %79 : vector<1x1x32xf32> to vector<1x32xf32>
    %81 = vector.broadcast %80 : vector<1x32xf32> to vector<8x32xf32>
    %82 = arith.addf %78, %81 : vector<8x32xf32>
    %c1_63 = arith.constant 1 : index
    %c0_64 = arith.constant 0 : index
    %c0_65 = arith.constant 0 : index
    %83 = vector.load %arg4[%c1_63, %c0_64, %c0_65] : memref<3x32x32xf32, #tpu.memory_space<vmem>>, vector<1x32x32xf32>
    %84 = vector.shape_cast %83 : vector<1x32x32xf32> to vector<32x32xf32>
    %cst_66 = arith.constant dense<0.000000e+00> : vector<8x32xf32>
    %85 = tpu.matmul %75, %84, %cst_66 {dimension_numbers = #tpu.dot_dimension_numbers<[1], [0], [0], [1], [0, 0, 1, 1], [], []>} : vector<8x32xf32>, vector<32x32xf32>, vector<8x32xf32> -> vector<8x32xf32>
    %c1_67 = arith.constant 1 : index
    %c0_68 = arith.constant 0 : index
    %c0_69 = arith.constant 0 : index
    %86 = vector.load %arg5[%c1_67, %c0_68, %c0_69] : memref<3x1x32xf32, #tpu.memory_space<vmem>>, vector<1x1x32xf32>
    %87 = vector.shape_cast %86 : vector<1x1x32xf32> to vector<1x32xf32>
    %88 = vector.broadcast %87 : vector<1x32xf32> to vector<8x32xf32>
    %89 = arith.addf %85, %88 : vector<8x32xf32>
    %c2_70 = arith.constant 2 : index
    %c0_71 = arith.constant 0 : index
    %c0_72 = arith.constant 0 : index
    %90 = vector.load %arg4[%c2_70, %c0_71, %c0_72] : memref<3x32x32xf32, #tpu.memory_space<vmem>>, vector<1x32x32xf32>
    %91 = vector.shape_cast %90 : vector<1x32x32xf32> to vector<32x32xf32>
    %cst_73 = arith.constant dense<0.000000e+00> : vector<8x32xf32>
    %92 = tpu.matmul %75, %91, %cst_73 {dimension_numbers = #tpu.dot_dimension_numbers<[1], [0], [0], [1], [0, 0, 1, 1], [], []>} : vector<8x32xf32>, vector<32x32xf32>, vector<8x32xf32> -> vector<8x32xf32>
    %c2_74 = arith.constant 2 : index
    %c0_75 = arith.constant 0 : index
    %c0_76 = arith.constant 0 : index
    %93 = vector.load %arg5[%c2_74, %c0_75, %c0_76] : memref<3x1x32xf32, #tpu.memory_space<vmem>>, vector<1x1x32xf32>
    %94 = vector.shape_cast %93 : vector<1x1x32xf32> to vector<1x32xf32>
    %95 = vector.broadcast %94 : vector<1x32xf32> to vector<8x32xf32>
    %96 = arith.addf %92, %95 : vector<8x32xf32>
    %97 = arith.negf %82 : vector<8x32xf32>
    %98 = math.exp %97 : vector<8x32xf32>
    %cst_77 = arith.constant 1.000000e+00 : f32
    %99 = vector.broadcast %cst_77 : f32 to vector<8x32xf32>
    %100 = arith.addf %99, %98 : vector<8x32xf32>
    %101 = arith.divf %99, %100 : vector<8x32xf32>
    %102 = math.tanh %89 : vector<8x32xf32>
    %103 = arith.mulf %101, %102 : vector<8x32xf32>
    %104 = arith.negf %96 : vector<8x32xf32>
    %105 = math.exp %104 : vector<8x32xf32>
    %cst_78 = arith.constant 1.000000e+00 : f32
    %106 = vector.broadcast %cst_78 : f32 to vector<8x32xf32>
    %107 = arith.addf %106, %105 : vector<8x32xf32>
    %108 = arith.divf %106, %107 : vector<8x32xf32>
    %109 = math.tanh %103 : vector<8x32xf32>
    %110 = arith.mulf %108, %109 : vector<8x32xf32>
    %c0_79 = arith.constant 0 : index
    %c0_80 = arith.constant 0 : index
    %111 = vector.load %arg6[%c0_79, %c0_80] : memref<32x128xf32, #tpu.memory_space<vmem>>, vector<32x128xf32>
    %cst_81 = arith.constant dense<0.000000e+00> : vector<8x128xf32>
    %112 = tpu.matmul %110, %111, %cst_81 {dimension_numbers = #tpu.dot_dimension_numbers<[1], [0], [0], [1], [0, 0, 1, 1], [], []>} : vector<8x32xf32>, vector<32x128xf32>, vector<8x128xf32> -> vector<8x128xf32>
    %c0_82 = arith.constant 0 : index
    %c0_83 = arith.constant 0 : index
    %113 = vector.load %arg7[%c0_82, %c0_83] : memref<1x128xf32, #tpu.memory_space<vmem>>, vector<1x128xf32>
    %114 = vector.broadcast %113 : vector<1x128xf32> to vector<8x128xf32>
    %115 = arith.addf %112, %114 : vector<8x128xf32>
    %c0_84 = arith.constant 0 : index
    %c0_85 = arith.constant 0 : index
    %116 = vector.load %arg8[%c0_84, %c0_85] : memref<8x128xf32, #tpu.memory_space<vmem>>, vector<8x128xf32>
    tpu.vector_store %arg8[%c0_84, %c0_85], %115 {strides = array<i32>} : memref<8x128xf32, #tpu.memory_space<vmem>>, vector<8x128xf32>,
    %117 = tpu.concatenate %75, %110, %68, %103 in 1 : vector<8x32xf32>, vector<8x32xf32>, vector<8x32xf32>, vector<8x32xf32> -> vector<8x128xf32>
    %c0_86 = arith.constant 0 : index
    %c0_87 = arith.constant 0 : index
    %118 = vector.load %arg9[%c0_86, %c0_87] : memref<8x128xf32, #tpu.memory_space<vmem>>, vector<8x128xf32>
    tpu.vector_store %arg9[%c0_86, %c0_87], %117 {strides = array<i32>} : memref<8x128xf32, #tpu.memory_space<vmem>>, vector<8x128xf32>,
    return
  }
}

</mosaic_0001>

<llo_original>
// kernel: decoder_forward.1
$region0: #{decoder_forward.1}
  #allocation0 [shape = 'u32[]', space=smem, size = 0x4, offset = 0x4, fixed_abs, tag = 'smem constant byte address 0x4 - core index']
  #allocation1 [shape = 'u32[144,128]{1,0:T(1,128)}', space=vmem, size = 0x12000, scoped, tag = 'internal scratch']
  #allocation2 [shape = 'f32[8,32]{1,0:T(8,128)}', space=vmem, size = 0x1000, scoped, tag = 'scratch operand']
  %s0 = inlined_call_operand.vmem [shape: s32[8], index: 0, kind: input, shape index: {}]
  %s1 = inlined_call_operand.vmem [shape: f32[50,1,32], index: 1, kind: input, shape index: {}]
  %s2 = inlined_call_operand.vmem [shape: f32[3,32,32], index: 2, kind: input, shape index: {}]
  %s3 = inlined_call_operand.hbm [shape: f32[3,1,32], index: 3, kind: input, shape index: {}]
  %s4 = inlined_call_operand.hbm [shape: f32[3,32,32], index: 4, kind: input, shape index: {}]
  %s5 = inlined_call_operand.hbm [shape: f32[3,1,32], index: 5, kind: input, shape index: {}]
  %s6 = inlined_call_operand.hbm [shape: f32[32,128], index: 6, kind: input, shape index: {}]
  %s7 = inlined_call_operand.hbm [shape: f32[1,128], index: 7, kind: input, shape index: {}]
  %s8 = inlined_call_operand.hbm [shape: f32[8,128], index: 8, kind: output, shape index: {0}]
  %s9 = inlined_call_operand.vmem [shape: f32[8,128], index: 9, kind: output, shape index: {1}]
  %10 = xla_tuple %s8, %s9
  %s11 = sld [smem:[#allocation0]]
  $region74: #{decoder_forward.1} parent=0
    _
  %s13 = ssub.s32 1, %s11
  %s14 = scalar_select 0, %s13, %s11
  $region1: #{decoder_forward.1} parent=0
    #allocation3 [shape = 'u8[512]{0}', space=smem, size = 0x200, scoped, tag = 'input window, operand 0, single buffered']
    #allocation4 [shape = 's32[1]{0}', space=sflag, size = 0x4, scoped, tag = 'scoped memory for decoder_forward.1']
    #allocation5 [shape = 's32[1]{0}', space=sflag, size = 0x4, scoped, tag = 'scoped memory for decoder_forward.1']
    #allocation6 [shape = 's32[1]{0}', space=sflag, size = 0x4, scoped, tag = 'scoped memory for decoder_forward.1']
    #allocation7 [shape = 'u8[1536]{0}', space=vmem, size = 0x800, scoped, tag = 'input window, operand 3, single buffered']
    #allocation8 [shape = 'u8[49152]{0}', space=vmem, size = 0xc000, scoped, tag = 'input window, operand 4, single buffered']
    #allocation9 [shape = 's32[1]{0}', space=sflag, size = 0x4, scoped, tag = 'scoped memory for decoder_forward.1']
    #allocation10 [shape = 'u8[1536]{0}', space=vmem, size = 0x800, scoped, tag = 'input window, operand 5, single buffered']
    #allocation11 [shape = 'u8[16384]{0}', space=vmem, size = 0x4000, scoped, tag = 'input window, operand 6, single buffered']
    #allocation12 [shape = 's32[1]{0}', space=sflag, size = 0x4, scoped, tag = 'scoped memory for decoder_forward.1']
    #allocation13 [shape = 'u8[512]{0}', space=vmem, size = 0x400, scoped, tag = 'input window, operand 7, single buffered']
    #allocation14 [shape = 'u8[4096]{0}', space=vmem, size = 0x1000, scoped, tag = 'output window, operand 0, single buffered']
    %15 = vsyncpa [#allocation6], 0
    %16 = vsyncpa [#allocation4], 0
    %17 = vsyncpa [#allocation9], 0
    %18 = vsyncpa [#allocation12], 0
    %19 = vsyncpa [#allocation5], 0
    // Predicated region
    $region2: #{decoder_forward.1} parent=1 // pred_check
      _
    $region3: #{decoder_forward.1} parent=1 // pred_check_branch
      %21 = sbr.rel (0) target = $region5
    $region4: #{decoder_forward.1} parent=1 // pred_region
      %s23 = ssub.s32 16, 16
      %24 = vsyncadd [#allocation6], %s23
      %s26 = sshll.u32 %s0, 4
      %s27 = int_to_ptr.vmem [resolvable:$true] %s26
      %29 = dma.vmem_to_smem %s27, 16, [#allocation3], [#allocation6]
    $region5: #{decoder_forward.1} parent=1 // pred_fallthru
      _
    // Predicated region
    $region6: #{decoder_forward.1} parent=1 // pred_check
      _
    $region7: #{decoder_forward.1} parent=1 // pred_check_branch
      %31 = sbr.rel (0) target = $region9
    $region8: #{decoder_forward.1} parent=1 // pred_region
      _
    $region9: #{decoder_forward.1} parent=1 // pred_fallthru
      _
    // Predicated region
    $region10: #{decoder_forward.1} parent=1 // pred_check
      _
    $region11: #{decoder_forward.1} parent=1 // pred_check_branch
      %33 = sbr.rel (0) target = $region13
    $region12: #{decoder_forward.1} parent=1 // pred_region
      _
    $region13: #{decoder_forward.1} parent=1 // pred_fallthru
      _
    // Predicated region
    $region14: #{decoder_forward.1} parent=1 // pred_check
      _
    $region15: #{decoder_forward.1} parent=1 // pred_check_branch
      %35 = sbr.rel (0) target = $region17
    $region16: #{decoder_forward.1} parent=1 // pred_region
      %s37 = ssub.s32 48, 48
      %38 = vsyncadd [#allocation4], %s37
      %s39 = sshll.u32 [#allocation7], 4
      %s40 = int_to_ptr.vmem [resolvable:$true] %s39
      %45 = dma.hbm_to_vmem [thread:$0]  %s3, 48, %s40, [#allocation4], 16, 16, 1
    $region17: #{decoder_forward.1} parent=1 // pred_fallthru
      _
    // Predicated region
    $region18: #{decoder_forward.1} parent=1 // pred_check
      _
    $region19: #{decoder_forward.1} parent=1 // pred_check_branch
      %47 = sbr.rel (0) target = $region21
    $region20: #{decoder_forward.1} parent=1 // pred_region
      %s49 = ssub.s32 1536, 1536
      %50 = vsyncadd [#allocation9], %s49
      %s51 = sshll.u32 [#allocation8], 4
      %s52 = int_to_ptr.vmem [resolvable:$true] %s51
      %57 = dma.hbm_to_vmem [thread:$0]  %s4, 1536, %s52, [#allocation9], 128, 128, 8
    $region21: #{decoder_forward.1} parent=1 // pred_fallthru
      _
    // Predicated region
    $region22: #{decoder_forward.1} parent=1 // pred_check
      _
    $region23: #{decoder_forward.1} parent=1 // pred_check_branch
      %59 = sbr.rel (0) target = $region25
    $region24: #{decoder_forward.1} parent=1 // pred_region
      %s61 = ssub.s32 48, 48
      %62 = vsyncadd [#allocation9], %s61
      %s63 = sshll.u32 [#allocation10], 4
      %s64 = int_to_ptr.vmem [resolvable:$true] %s63
      %69 = dma.hbm_to_vmem [thread:$0]  %s5, 48, %s64, [#allocation9], 16, 16, 1
    $region25: #{decoder_forward.1} parent=1 // pred_fallthru
      _
    // Predicated region
    $region26: #{decoder_forward.1} parent=1 // pred_check
      _
    $region27: #{decoder_forward.1} parent=1 // pred_check_branch
      %71 = sbr.rel (0) target = $region29
    $region28: #{decoder_forward.1} parent=1 // pred_region
      %s73 = ssub.s32 512, 512
      %74 = vsyncadd [#allocation12], %s73
      %s75 = sshll.u32 [#allocation11], 4
      %s76 = int_to_ptr.vmem [resolvable:$true] %s75
      %81 = dma.hbm_to_vmem [thread:$0]  %s6, 512, %s76, [#allocation12], 128, 128, 8
    $region29: #{decoder_forward.1} parent=1 // pred_fallthru
      _
    // Predicated region
    $region30: #{decoder_forward.1} parent=1 // pred_check
      _
    $region31: #{decoder_forward.1} parent=1 // pred_check_branch
      %83 = sbr.rel (0) target = $region33
    $region32: #{decoder_forward.1} parent=1 // pred_region
      %s85 = ssub.s32 16, 16
      %86 = vsyncadd [#allocation12], %s85
      %s88 = sshll.u32 [#allocation13], 4
      %s89 = int_to_ptr.vmem [resolvable:$true] %s88
      %91 = dma.hbm_to_vmem [thread:$0]  %s7, 16, %s89, [#allocation12]
    $region33: #{decoder_forward.1} parent=1 // pred_fallthru
      _
    // Predicated region
    $region34: #{decoder_forward.1} parent=1 // pred_check
      _
    $region35: #{decoder_forward.1} parent=1 // pred_check_branch
      %93 = sbr.rel (0) target = $region37
    $region36: #{decoder_forward.1} parent=1 // pred_region
      %94 = dma.done [#allocation6], 16
    $region37: #{decoder_forward.1} parent=1 // pred_fallthru
      _
    // Predicated region
    $region38: #{decoder_forward.1} parent=1 // pred_check
      _
    $region39: #{decoder_forward.1} parent=1 // pred_check_branch
      %96 = sbr.rel (0) target = $region41
    $region40: #{decoder_forward.1} parent=1 // pred_region
      %97 = dma.done [#allocation4], 48
    $region41: #{decoder_forward.1} parent=1 // pred_fallthru
      _
    // Predicated region
    $region42: #{decoder_forward.1} parent=1 // pred_check
      _
    $region43: #{decoder_forward.1} parent=1 // pred_check_branch
      %99 = sbr.rel (0) target = $region45
    $region44: #{decoder_forward.1} parent=1 // pred_region
      %100 = dma.done [#allocation9], 1536
    $region45: #{decoder_forward.1} parent=1 // pred_fallthru
      _
    // Predicated region
    $region46: #{decoder_forward.1} parent=1 // pred_check
      _
    $region47: #{decoder_forward.1} parent=1 // pred_check_branch
      %102 = sbr.rel (0) target = $region49
    $region48: #{decoder_forward.1} parent=1 // pred_region
      %103 = dma.done [#allocation9], 48
    $region49: #{decoder_forward.1} parent=1 // pred_fallthru
      _
    // Predicated region
    $region50: #{decoder_forward.1} parent=1 // pred_check
      _
    $region51: #{decoder_forward.1} parent=1 // pred_check_branch
      %105 = sbr.rel (0) target = $region53
    $region52: #{decoder_forward.1} parent=1 // pred_region
      %106 = dma.done [#allocation12], 512
    $region53: #{decoder_forward.1} parent=1 // pred_fallthru
      _
    // Predicated region
    $region54: #{decoder_forward.1} parent=1 // pred_check
      _
    $region55: #{decoder_forward.1} parent=1 // pred_check_branch
      %108 = sbr.rel (0) target = $region57
    $region56: #{decoder_forward.1} parent=1 // pred_region
      %109 = dma.done [#allocation12], 16
    $region57: #{decoder_forward.1} parent=1 // pred_fallthru
      _
    %110 = sfence
    %s111 = sld [smem:[#allocation3]]
    %s112 = scalar_lea.vmem %s1, %s111
    %v113 = vld [vmem:[%s112] sm:$0x1]
    %vm114 = vcmask 253952
    %115 = vst.msk [vmem:[#allocation2] sm:$0x1] %vm114, %v113
    %s116 = sld [smem:[#allocation3 + $0x1]]
    %s117 = scalar_lea.vmem %s1, %s116
    %v118 = vld [vmem:[%s117] sm:$0x1]
    %119 = vst.msk [vmem:[#allocation2 + $0x1] sm:$0x1] %vm114, %v118
    %s120 = sld [smem:[#allocation3 + $0x2]]
    %s121 = scalar_lea.vmem %s1, %s120
    %v122 = vld [vmem:[%s121] sm:$0x1]
    %123 = vst.msk [vmem:[#allocation2 + $0x2] sm:$0x1] %vm114, %v122
    %s124 = sld [smem:[#allocation3 + $0x3]]
    %s125 = scalar_lea.vmem %s1, %s124
    %v126 = vld [vmem:[%s125] sm:$0x1]
    %127 = vst.msk [vmem:[#allocation2 + $0x3] sm:$0x1] %vm114, %v126
    %s128 = sld [smem:[#allocation3 + $0x4]]
    %s129 = scalar_lea.vmem %s1, %s128
    %v130 = vld [vmem:[%s129] sm:$0x1]
    %131 = vst.msk [vmem:[#allocation2 + $0x4] sm:$0x1] %vm114, %v130
    %s132 = sld [smem:[#allocation3 + $0x5]]
    %s133 = scalar_lea.vmem %s1, %s132
    %v134 = vld [vmem:[%s133] sm:$0x1]
    %135 = vst.msk [vmem:[#allocation2 + $0x5] sm:$0x1] %vm114, %v134
    %s136 = sld [smem:[#allocation3 + $0x6]]
    %s137 = scalar_lea.vmem %s1, %s136
    %v138 = vld [vmem:[%s137] sm:$0x1]
    %139 = vst.msk [vmem:[#allocation2 + $0x6] sm:$0x1] %vm114, %v138
    %s140 = sld [smem:[#allocation3 + $0x7]]
    %s141 = scalar_lea.vmem %s1, %s140
    %v142 = vld [vmem:[%s141] sm:$0x1]
    %143 = vst.msk [vmem:[#allocation2 + $0x7] sm:$0x1] %vm114, %v142
    %v144 = vld [vmem:[#allocation2] sm:$0xff]
    %v145 = vld [vmem:[%s2] sm:$0xff]
    %v146 = vld [vmem:[%s2 + $0x8] sm:$0xff]
    %v147 = vld [vmem:[%s2 + $0x10] sm:$0xff]
    %v148 = vld [vmem:[%s2 + $0x18] sm:$0xff]
    %v149 = vld [vmem:[#allocation7] sm:$0x1]
    %v151 = vlaneseq
    %v152 = vshrl.u32 %v151, 7
    %v153 = vsub.s32 0, %v152
    %v154 = vrot.slane %v149, %v153
    %vm156 = vcmask 261120
    %v158 = vsel %vm156, %v144, 0
    %160 = vmatprep.subr.mxu0 0.0
    %161 = vmatpush1.msra.mxu0 %v145
    %162 = vmatprep.subr.mxu0 0.0
    %163 = vmatpush1.msra.mxu0 %v146
    %164 = vmatprep.subr.mxu0 0.0
    %165 = vmatpush1.msra.mxu0 %v147
    %166 = vmatprep.subr.mxu0 0.0
    %167 = vmatpush1.msra.mxu0 %v148
    %168 = vmatprep.subr.mxu0 0.0
    %169 = vmatpush1.msra.mxu0 0.0
    %170 = vmatprep.subr.mxu0 0.0
    %171 = vmatpush1.msra.mxu0 0.0
    %172 = vmatprep.subr.mxu0 0.0
    %173 = vmatpush1.msra.mxu0 0.0
    %174 = vmatprep.subr.mxu0 0.0
    %175 = vmatpush1.msra.mxu0 0.0
    %176 = vmatprep.subr.mxu0 0.0
    %177 = vmatpush1.msra.mxu0 0.0
    %178 = vmatprep.subr.mxu0 0.0
    %179 = vmatpush1.msra.mxu0 0.0
    %180 = vmatprep.subr.mxu0 0.0
    %181 = vmatpush1.msra.mxu0 0.0
    %182 = vmatprep.subr.mxu0 0.0
    %183 = vmatpush1.msra.mxu0 0.0
    %184 = vmatprep.subr.mxu0 0.0
    %185 = vmatpush1.msra.mxu0 0.0
    %186 = vmatprep.subr.mxu0 0.0
    %187 = vmatpush1.msra.mxu0 0.0
    %188 = vmatprep.subr.mxu0 0.0
    %189 = vmatpush1.msra.mxu0 0.0
    %190 = vmatprep.subr.mxu0 0.0
    %191 = vmatpush1.msra.mxu0 0.0
    %192 = vmatprep.subr.mxu0 0.0
    %193 = vmatpush1.msra.mxu0 0.0
    %194 = vmatprep.subr.mxu0 0.0
    %195 = vmatpush1.msra.mxu0 0.0
    %196 = vmatprep.subr.mxu0 0.0
    %197 = vmatpush1.msra.mxu0 0.0
    %198 = vmatprep.subr.mxu0 0.0
    %199 = vmatpush1.msra.mxu0 0.0
    %200 = vmatprep.subr.mxu0 0.0
    %201 = vmatpush1.msra.mxu0 0.0
    %202 = vmatprep.subr.mxu0 0.0
    %203 = vmatpush1.msra.mxu0 0.0
    %204 = vmatprep.subr.mxu0 0.0
    %205 = vmatpush1.msra.mxu0 0.0
    %206 = vmatprep.subr.mxu0 0.0
    %207 = vmatpush1.msra.mxu0 0.0
    %208 = vmatprep.subr.mxu0 0.0
    %209 = vmatpush1.msra.mxu0 0.0
    %210 = vmatprep.subr.mxu0 0.0
    %211 = vmatpush1.msra.mxu0 0.0
    %212 = vmatprep.subr.mxu0 0.0
    %213 = vmatpush1.msra.mxu0 0.0
    %214 = vmatprep.subr.mxu0 0.0
    %215 = vmatpush1.msra.mxu0 0.0
    %216 = vmatprep.subr.mxu0 0.0
    %217 = vmatpush1.msra.mxu0 0.0
    %218 = vmatprep.subr.mxu0 0.0
    %219 = vmatpush1.msra.mxu0 0.0
    %220 = vmatprep.subr.mxu0 0.0
    %221 = vmatpush1.msra.mxu0 0.0
    %222 = vmatprep.subr.mxu0 0.0
    %223 = vmatpush1.msra.mxu0 0.0
    %224 = vmatprep.mubr.f32.mxu0 0.0
    %225 = vmatmul.mubr.f32.gmra.mrb[0].mxu0 %v158
    %v226 = vpop.f32.mrb[0].mxu0
    %v227 = vadd.f32 %v154, %v226
    %v228 = vpop.f32.mrb[0].mxu0
    %229 = vdwg.mxu0
    %s230 = scalar_lea.vmem %s2, 32
    %v231 = vld [vmem:[%s230] sm:$0xff]
    %v232 = vld [vmem:[%s230 + $0x8] sm:$0xff]
    %v233 = vld [vmem:[%s230 + $0x10] sm:$0xff]
    %v234 = vld [vmem:[%s230 + $0x18] sm:$0xff]
    %s235 = scalar_lea.vmem [#allocation7], 1
    %v236 = vld [vmem:[%s235] sm:$0x1]
    %v238 = vlaneseq
    %v239 = vshrl.u32 %v238, 7
    %v240 = vsub.s32 0, %v239
    %v241 = vrot.slane %v236, %v240
    %243 = vmatprep.subr.mxu0 0.0
    %244 = vmatpush1.msra.mxu0 %v231
    %245 = vmatprep.subr.mxu0 0.0
    %246 = vmatpush1.msra.mxu0 %v232
    %247 = vmatprep.subr.mxu0 0.0
    %248 = vmatpush1.msra.mxu0 %v233
    %249 = vmatprep.subr.mxu0 0.0
    %250 = vmatpush1.msra.mxu0 %v234
    %251 = vmatprep.subr.mxu0 0.0
    %252 = vmatpush1.msra.mxu0 0.0
    %253 = vmatprep.subr.mxu0 0.0
    %254 = vmatpush1.msra.mxu0 0.0
    %255 = vmatprep.subr.mxu0 0.0
    %256 = vmatpush1.msra.mxu0 0.0
    %257 = vmatprep.subr.mxu0 0.0
    %258 = vmatpush1.msra.mxu0 0.0
    %259 = vmatprep.subr.mxu0 0.0
    %260 = vmatpush1.msra.mxu0 0.0
    %261 = vmatprep.subr.mxu0 0.0
    %262 = vmatpush1.msra.mxu0 0.0
    %263 = vmatprep.subr.mxu0 0.0
    %264 = vmatpush1.msra.mxu0 0.0
    %265 = vmatprep.subr.mxu0 0.0
    %266 = vmatpush1.msra.mxu0 0.0
    %267 = vmatprep.subr.mxu0 0.0
    %268 = vmatpush1.msra.mxu0 0.0
    %269 = vmatprep.subr.mxu0 0.0
    %270 = vmatpush1.msra.mxu0 0.0
    %271 = vmatprep.subr.mxu0 0.0
    %272 = vmatpush1.msra.mxu0 0.0
    %273 = vmatprep.subr.mxu0 0.0
    %274 = vmatpush1.msra.mxu0 0.0
    %275 = vmatprep.subr.mxu0 0.0
    %276 = vmatpush1.msra.mxu0 0.0
    %277 = vmatprep.subr.mxu0 0.0
    %278 = vmatpush1.msra.mxu0 0.0
    %279 = vmatprep.subr.mxu0 0.0
    %280 = vmatpush1.msra.mxu0 0.0
    %281 = vmatprep.subr.mxu0 0.0
    %282 = vmatpush1.msra.mxu0 0.0
    %283 = vmatprep.subr.mxu0 0.0
    %284 = vmatpush1.msra.mxu0 0.0
    %285 = vmatprep.subr.mxu0 0.0
    %286 = vmatpush1.msra.mxu0 0.0
    %287 = vmatprep.subr.mxu0 0.0
    %288 = vmatpush1.msra.mxu0 0.0
    %289 = vmatprep.subr.mxu0 0.0
    %290 = vmatpush1.msra.mxu0 0.0
    %291 = vmatprep.subr.mxu0 0.0
    %292 = vmatpush1.msra.mxu0 0.0
    %293 = vmatprep.subr.mxu0 0.0
    %294 = vmatpush1.msra.mxu0 0.0
    %295 = vmatprep.subr.mxu0 0.0
    %296 = vmatpush1.msra.mxu0 0.0
    %297 = vmatprep.subr.mxu0 0.0
    %298 = vmatpush1.msra.mxu0 0.0
    %299 = vmatprep.subr.mxu0 0.0
    %300 = vmatpush1.msra.mxu0 0.0
    %301 = vmatprep.subr.mxu0 0.0
    %302 = vmatpush1.msra.mxu0 0.0
    %303 = vmatprep.subr.mxu0 0.0
    %304 = vmatpush1.msra.mxu0 0.0
    %305 = vmatprep.subr.mxu0 0.0
    %306 = vmatpush1.msra.mxu0 0.0
    %307 = vmatprep.mubr.f32.mxu0 0.0
    %308 = vmatmul.mubr.f32.gmra.mrb[0].mxu0 %v158
    %v309 = vpop.f32.mrb[0].mxu0
    %v310 = vadd.f32 %v241, %v309
    %v311 = vpop.f32.mrb[0].mxu0
    %312 = vdwg.mxu0
    %s313 = scalar_lea.vmem %s2, 64
    %v314 = vld [vmem:[%s313] sm:$0xff]
    %v315 = vld [vmem:[%s313 + $0x8] sm:$0xff]
    %v316 = vld [vmem:[%s313 + $0x10] sm:$0xff]
    %v317 = vld [vmem:[%s313 + $0x18] sm:$0xff]
    %s318 = scalar_lea.vmem [#allocation7], 2
    %v319 = vld [vmem:[%s318] sm:$0x1]
    %v321 = vlaneseq
    %v322 = vshrl.u32 %v321, 7
    %v323 = vsub.s32 0, %v322
    %v324 = vrot.slane %v319, %v323
    %326 = vmatprep.subr.mxu0 0.0
    %327 = vmatpush1.msra.mxu0 %v314
    %328 = vmatprep.subr.mxu0 0.0
    %329 = vmatpush1.msra.mxu0 %v315
    %330 = vmatprep.subr.mxu0 0.0
    %331 = vmatpush1.msra.mxu0 %v316
    %332 = vmatprep.subr.mxu0 0.0
    %333 = vmatpush1.msra.mxu0 %v317
    %334 = vmatprep.subr.mxu0 0.0
    %335 = vmatpush1.msra.mxu0 0.0
    %336 = vmatprep.subr.mxu0 0.0
    %337 = vmatpush1.msra.mxu0 0.0
    %338 = vmatprep.subr.mxu0 0.0
    %339 = vmatpush1.msra.mxu0 0.0
    %340 = vmatprep.subr.mxu0 0.0
    %341 = vmatpush1.msra.mxu0 0.0
    %342 = vmatprep.subr.mxu0 0.0
    %343 = vmatpush1.msra.mxu0 0.0
    %344 = vmatprep.subr.mxu0 0.0
    %345 = vmatpush1.msra.mxu0 0.0
    %346 = vmatprep.subr.mxu0 0.0
    %347 = vmatpush1.msra.mxu0 0.0
    %348 = vmatprep.subr.mxu0 0.0
    %349 = vmatpush1.msra.mxu0 0.0
    %350 = vmatprep.subr.mxu0 0.0
    %351 = vmatpush1.msra.mxu0 0.0
    %352 = vmatprep.subr.mxu0 0.0
    %353 = vmatpush1.msra.mxu0 0.0
    %354 = vmatprep.subr.mxu0 0.0
    %355 = vmatpush1.msra.mxu0 0.0
    %356 = vmatprep.subr.mxu0 0.0
    %357 = vmatpush1.msra.mxu0 0.0
    %358 = vmatprep.subr.mxu0 0.0
    %359 = vmatpush1.msra.mxu0 0.0
    %360 = vmatprep.subr.mxu0 0.0
    %361 = vmatpush1.msra.mxu0 0.0
    %362 = vmatprep.subr.mxu0 0.0
    %363 = vmatpush1.msra.mxu0 0.0
    %364 = vmatprep.subr.mxu0 0.0
    %365 = vmatpush1.msra.mxu0 0.0
    %366 = vmatprep.subr.mxu0 0.0
    %367 = vmatpush1.msra.mxu0 0.0
    %368 = vmatprep.subr.mxu0 0.0
    %369 = vmatpush1.msra.mxu0 0.0
    %370 = vmatprep.subr.mxu0 0.0
    %371 = vmatpush1.msra.mxu0 0.0
    %372 = vmatprep.subr.mxu0 0.0
    %373 = vmatpush1.msra.mxu0 0.0
    %374 = vmatprep.subr.mxu0 0.0
    %375 = vmatpush1.msra.mxu0 0.0
    %376 = vmatprep.subr.mxu0 0.0
    %377 = vmatpush1.msra.mxu0 0.0
    %378 = vmatprep.subr.mxu0 0.0
    %379 = vmatpush1.msra.mxu0 0.0
    %380 = vmatprep.subr.mxu0 0.0
    %381 = vmatpush1.msra.mxu0 0.0
    %382 = vmatprep.subr.mxu0 0.0
    %383 = vmatpush1.msra.mxu0 0.0
    %384 = vmatprep.subr.mxu0 0.0
    %385 = vmatpush1.msra.mxu0 0.0
    %386 = vmatprep.subr.mxu0 0.0
    %387 = vmatpush1.msra.mxu0 0.0
    %388 = vmatprep.subr.mxu0 0.0
    %389 = vmatpush1.msra.mxu0 0.0
    %390 = vmatprep.mubr.f32.mxu0 0.0
    %391 = vmatmul.mubr.f32.gmra.mrb[0].mxu0 %v158
    %v392 = vpop.f32.mrb[0].mxu0
    %v393 = vadd.f32 %v324, %v392
    %v394 = vpop.f32.mrb[0].mxu0
    %395 = vdwg.mxu0
    %v396 = vxor.u32 %v227, 2147483648
    %v397 = vmul.f32 %v396, 1.442695
    %v398 = vpow.pop %v397
    %v399 = vadd.f32 %v398, 1.0
    %v400 = vrcp.pop %v399
    %v401 = vmul.f32 1.0, %v400
    %v402 = vtanh.pop %v310
    %v403 = vmul.f32 %v401, %v402
    %v404 = vxor.u32 %v393, 2147483648
    %v405 = vmul.f32 %v404, 1.442695
    %v406 = vpow.pop %v405
    %v407 = vadd.f32 %v406, 1.0
    %v408 = vrcp.pop %v407
    %v409 = vmul.f32 1.0, %v408
    %v410 = vtanh.pop %v403
    %v411 = vmul.f32 %v409, %v410
    %v412 = vld [vmem:[#allocation8] sm:$0xff]
    %v413 = vld [vmem:[#allocation8 + $0x8] sm:$0xff]
    %v414 = vld [vmem:[#allocation8 + $0x10] sm:$0xff]
    %v415 = vld [vmem:[#allocation8 + $0x18] sm:$0xff]
    %v416 = vld [vmem:[#allocation10] sm:$0x1]
    %v418 = vlaneseq
    %v419 = vshrl.u32 %v418, 7
    %v420 = vsub.s32 0, %v419
    %v421 = vrot.slane %v416, %v420
    %v424 = vsel %vm156, %v411, 0
    %426 = vmatprep.subr.mxu0 0.0
    %427 = vmatpush1.msra.mxu0 %v412
    %428 = vmatprep.subr.mxu0 0.0
    %429 = vmatpush1.msra.mxu0 %v413
    %430 = vmatprep.subr.mxu0 0.0
    %431 = vmatpush1.msra.mxu0 %v414
    %432 = vmatprep.subr.mxu0 0.0
    %433 = vmatpush1.msra.mxu0 %v415
    %434 = vmatprep.subr.mxu0 0.0
    %435 = vmatpush1.msra.mxu0 0.0
    %436 = vmatprep.subr.mxu0 0.0
    %437 = vmatpush1.msra.mxu0 0.0
    %438 = vmatprep.subr.mxu0 0.0
    %439 = vmatpush1.msra.mxu0 0.0
    %440 = vmatprep.subr.mxu0 0.0
    %441 = vmatpush1.msra.mxu0 0.0
    %442 = vmatprep.subr.mxu0 0.0
    %443 = vmatpush1.msra.mxu0 0.0
    %444 = vmatprep.subr.mxu0 0.0
    %445 = vmatpush1.msra.mxu0 0.0
    %446 = vmatprep.subr.mxu0 0.0
    %447 = vmatpush1.msra.mxu0 0.0
    %448 = vmatprep.subr.mxu0 0.0
    %449 = vmatpush1.msra.mxu0 0.0
    %450 = vmatprep.subr.mxu0 0.0
    %451 = vmatpush1.msra.mxu0 0.0
    %452 = vmatprep.subr.mxu0 0.0
    %453 = vmatpush1.msra.mxu0 0.0
    %454 = vmatprep.subr.mxu0 0.0
    %455 = vmatpush1.msra.mxu0 0.0
    %456 = vmatprep.subr.mxu0 0.0
    %457 = vmatpush1.msra.mxu0 0.0
    %458 = vmatprep.subr.mxu0 0.0
    %459 = vmatpush1.msra.mxu0 0.0
    %460 = vmatprep.subr.mxu0 0.0
    %461 = vmatpush1.msra.mxu0 0.0
    %462 = vmatprep.subr.mxu0 0.0
    %463 = vmatpush1.msra.mxu0 0.0
    %464 = vmatprep.subr.mxu0 0.0
    %465 = vmatpush1.msra.mxu0 0.0
    %466 = vmatprep.subr.mxu0 0.0
    %467 = vmatpush1.msra.mxu0 0.0
    %468 = vmatprep.subr.mxu0 0.0
    %469 = vmatpush1.msra.mxu0 0.0
    %470 = vmatprep.subr.mxu0 0.0
    %471 = vmatpush1.msra.mxu0 0.0
    %472 = vmatprep.subr.mxu0 0.0
    %473 = vmatpush1.msra.mxu0 0.0
    %474 = vmatprep.subr.mxu0 0.0
    %475 = vmatpush1.msra.mxu0 0.0
    %476 = vmatprep.subr.mxu0 0.0
    %477 = vmatpush1.msra.mxu0 0.0
    %478 = vmatprep.subr.mxu0 0.0
    %479 = vmatpush1.msra.mxu0 0.0
    %480 = vmatprep.subr.mxu0 0.0
    %481 = vmatpush1.msra.mxu0 0.0
    %482 = vmatprep.subr.mxu0 0.0
    %483 = vmatpush1.msra.mxu0 0.0
    %484 = vmatprep.subr.mxu0 0.0
    %485 = vmatpush1.msra.mxu0 0.0
    %486 = vmatprep.subr.mxu0 0.0
    %487 = vmatpush1.msra.mxu0 0.0
    %488 = vmatprep.subr.mxu0 0.0
    %489 = vmatpush1.msra.mxu0 0.0
    %490 = vmatprep.mubr.f32.mxu0 0.0
    %491 = vmatmul.mubr.f32.gmra.mrb[0].mxu0 %v424
    %v492 = vpop.f32.mrb[0].mxu0
    %v493 = vadd.f32 %v421, %v492
    %v494 = vpop.f32.mrb[0].mxu0
    %495 = vdwg.mxu0
    %s496 = scalar_lea.vmem [#allocation8], 32
    %v497 = vld [vmem:[%s496] sm:$0xff]
    %v498 = vld [vmem:[%s496 + $0x8] sm:$0xff]
    %v499 = vld [vmem:[%s496 + $0x10] sm:$0xff]
    %v500 = vld [vmem:[%s496 + $0x18] sm:$0xff]
    %s501 = scalar_lea.vmem [#allocation10], 1
    %v502 = vld [vmem:[%s501] sm:$0x1]
    %v504 = vlaneseq
    %v505 = vshrl.u32 %v504, 7
    %v506 = vsub.s32 0, %v505
    %v507 = vrot.slane %v502, %v506
    %509 = vmatprep.subr.mxu0 0.0
    %510 = vmatpush1.msra.mxu0 %v497
    %511 = vmatprep.subr.mxu0 0.0
    %512 = vmatpush1.msra.mxu0 %v498
    %513 = vmatprep.subr.mxu0 0.0
    %514 = vmatpush1.msra.mxu0 %v499
    %515 = vmatprep.subr.mxu0 0.0
    %516 = vmatpush1.msra.mxu0 %v500
    %517 = vmatprep.subr.mxu0 0.0
    %518 = vmatpush1.msra.mxu0 0.0
    %519 = vmatprep.subr.mxu0 0.0
    %520 = vmatpush1.msra.mxu0 0.0
    %521 = vmatprep.subr.mxu0 0.0
    %522 = vmatpush1.msra.mxu0 0.0
    %523 = vmatprep.subr.mxu0 0.0
    %524 = vmatpush1.msra.mxu0 0.0
    %525 = vmatprep.subr.mxu0 0.0
    %526 = vmatpush1.msra.mxu0 0.0
    %527 = vmatprep.subr.mxu0 0.0
    %528 = vmatpush1.msra.mxu0 0.0
    %529 = vmatprep.subr.mxu0 0.0
    %530 = vmatpush1.msra.mxu0 0.0
    %531 = vmatprep.subr.mxu0 0.0
    %532 = vmatpush1.msra.mxu0 0.0
    %533 = vmatprep.subr.mxu0 0.0
    %534 = vmatpush1.msra.mxu0 0.0
    %535 = vmatprep.subr.mxu0 0.0
    %536 = vmatpush1.msra.mxu0 0.0
    %537 = vmatprep.subr.mxu0 0.0
    %538 = vmatpush1.msra.mxu0 0.0
    %539 = vmatprep.subr.mxu0 0.0
    %540 = vmatpush1.msra.mxu0 0.0
    %541 = vmatprep.subr.mxu0 0.0
    %542 = vmatpush1.msra.mxu0 0.0
    %543 = vmatprep.subr.mxu0 0.0
    %544 = vmatpush1.msra.mxu0 0.0
    %545 = vmatprep.subr.mxu0 0.0
    %546 = vmatpush1.msra.mxu0 0.0
    %547 = vmatprep.subr.mxu0 0.0
    %548 = vmatpush1.msra.mxu0 0.0
    %549 = vmatprep.subr.mxu0 0.0
    %550 = vmatpush1.msra.mxu0 0.0
    %551 = vmatprep.subr.mxu0 0.0
    %552 = vmatpush1.msra.mxu0 0.0
    %553 = vmatprep.subr.mxu0 0.0
    %554 = vmatpush1.msra.mxu0 0.0
    %555 = vmatprep.subr.mxu0 0.0
    %556 = vmatpush1.msra.mxu0 0.0
    %557 = vmatprep.subr.mxu0 0.0
    %558 = vmatpush1.msra.mxu0 0.0
    %559 = vmatprep.subr.mxu0 0.0
    %560 = vmatpush1.msra.mxu0 0.0
    %561 = vmatprep.subr.mxu0 0.0
    %562 = vmatpush1.msra.mxu0 0.0
    %563 = vmatprep.subr.mxu0 0.0
    %564 = vmatpush1.msra.mxu0 0.0
    %565 = vmatprep.subr.mxu0 0.0
    %566 = vmatpush1.msra.mxu0 0.0
    %567 = vmatprep.subr.mxu0 0.0
    %568 = vmatpush1.msra.mxu0 0.0
    %569 = vmatprep.subr.mxu0 0.0
    %570 = vmatpush1.msra.mxu0 0.0
    %571 = vmatprep.subr.mxu0 0.0
    %572 = vmatpush1.msra.mxu0 0.0
    %573 = vmatprep.mubr.f32.mxu0 0.0
    %574 = vmatmul.mubr.f32.gmra.mrb[0].mxu0 %v424
    %v575 = vpop.f32.mrb[0].mxu0
    %v576 = vadd.f32 %v507, %v575
    %v577 = vpop.f32.mrb[0].mxu0
    %578 = vdwg.mxu0
    %s579 = scalar_lea.vmem [#allocation8], 64
    %v580 = vld [vmem:[%s579] sm:$0xff]
    %v581 = vld [vmem:[%s579 + $0x8] sm:$0xff]
    %v582 = vld [vmem:[%s579 + $0x10] sm:$0xff]
    %v583 = vld [vmem:[%s579 + $0x18] sm:$0xff]
    %s584 = scalar_lea.vmem [#allocation10], 2
    %v585 = vld [vmem:[%s584] sm:$0x1]
    %v587 = vlaneseq
    %v588 = vshrl.u32 %v587, 7
    %v589 = vsub.s32 0, %v588
    %v590 = vrot.slane %v585, %v589
    %592 = vmatprep.subr.mxu0 0.0
    %593 = vmatpush1.msra.mxu0 %v580
    %594 = vmatprep.subr.mxu0 0.0
    %595 = vmatpush1.msra.mxu0 %v581
    %596 = vmatprep.subr.mxu0 0.0
    %597 = vmatpush1.msra.mxu0 %v582
    %598 = vmatprep.subr.mxu0 0.0
    %599 = vmatpush1.msra.mxu0 %v583
    %600 = vmatprep.subr.mxu0 0.0
    %601 = vmatpush1.msra.mxu0 0.0
    %602 = vmatprep.subr.mxu0 0.0
    %603 = vmatpush1.msra.mxu0 0.0
    %604 = vmatprep.subr.mxu0 0.0
    %605 = vmatpush1.msra.mxu0 0.0
    %606 = vmatprep.subr.mxu0 0.0
    %607 = vmatpush1.msra.mxu0 0.0
    %608 = vmatprep.subr.mxu0 0.0
    %609 = vmatpush1.msra.mxu0 0.0
    %610 = vmatprep.subr.mxu0 0.0
    %611 = vmatpush1.msra.mxu0 0.0
    %612 = vmatprep.subr.mxu0 0.0
    %613 = vmatpush1.msra.mxu0 0.0
    %614 = vmatprep.subr.mxu0 0.0
    %615 = vmatpush1.msra.mxu0 0.0
    %616 = vmatprep.subr.mxu0 0.0
    %617 = vmatpush1.msra.mxu0 0.0
    %618 = vmatprep.subr.mxu0 0.0
    %619 = vmatpush1.msra.mxu0 0.0
    %620 = vmatprep.subr.mxu0 0.0
    %621 = vmatpush1.msra.mxu0 0.0
    %622 = vmatprep.subr.mxu0 0.0
    %623 = vmatpush1.msra.mxu0 0.0
    %624 = vmatprep.subr.mxu0 0.0
    %625 = vmatpush1.msra.mxu0 0.0
    %626 = vmatprep.subr.mxu0 0.0
    %627 = vmatpush1.msra.mxu0 0.0
    %628 = vmatprep.subr.mxu0 0.0
    %629 = vmatpush1.msra.mxu0 0.0
    %630 = vmatprep.subr.mxu0 0.0
    %631 = vmatpush1.msra.mxu0 0.0
    %632 = vmatprep.subr.mxu0 0.0
    %633 = vmatpush1.msra.mxu0 0.0
    %634 = vmatprep.subr.mxu0 0.0
    %635 = vmatpush1.msra.mxu0 0.0
    %636 = vmatprep.subr.mxu0 0.0
    %637 = vmatpush1.msra.mxu0 0.0
    %638 = vmatprep.subr.mxu0 0.0
    %639 = vmatpush1.msra.mxu0 0.0
    %640 = vmatprep.subr.mxu0 0.0
    %641 = vmatpush1.msra.mxu0 0.0
    %642 = vmatprep.subr.mxu0 0.0
    %643 = vmatpush1.msra.mxu0 0.0
    %644 = vmatprep.subr.mxu0 0.0
    %645 = vmatpush1.msra.mxu0 0.0
    %646 = vmatprep.subr.mxu0 0.0
    %647 = vmatpush1.msra.mxu0 0.0
    %648 = vmatprep.subr.mxu0 0.0
    %649 = vmatpush1.msra.mxu0 0.0
    %650 = vmatprep.subr.mxu0 0.0
    %651 = vmatpush1.msra.mxu0 0.0
    %652 = vmatprep.subr.mxu0 0.0
    %653 = vmatpush1.msra.mxu0 0.0
    %654 = vmatprep.subr.mxu0 0.0
    %655 = vmatpush1.msra.mxu0 0.0
    %656 = vmatprep.mubr.f32.mxu0 0.0
    %657 = vmatmul.mubr.f32.gmra.mrb[0].mxu0 %v424
    %v658 = vpop.f32.mrb[0].mxu0
    %v659 = vadd.f32 %v590, %v658
    %v660 = vpop.f32.mrb[0].mxu0
    %661 = vdwg.mxu0
    %v662 = vxor.u32 %v493, 2147483648
    %v663 = vmul.f32 %v662, 1.442695
    %v664 = vpow.pop %v663
    %v665 = vadd.f32 %v664, 1.0
    %v666 = vrcp.pop %v665
    %v667 = vmul.f32 1.0, %v666
    %v668 = vtanh.pop %v576
    %v669 = vmul.f32 %v667, %v668
    %v670 = vxor.u32 %v659, 2147483648
    %v671 = vmul.f32 %v670, 1.442695
    %v672 = vpow.pop %v671
    %v673 = vadd.f32 %v672, 1.0
    %v674 = vrcp.pop %v673
    %v675 = vmul.f32 1.0, %v674
    %v676 = vtanh.pop %v669
    %v677 = vmul.f32 %v675, %v676
    %v678 = vld [vmem:[#allocation11] sm:$0xff]
    %v679 = vld [vmem:[#allocation11 + $0x8] sm:$0xff]
    %v680 = vld [vmem:[#allocation11 + $0x10] sm:$0xff]
    %v681 = vld [vmem:[#allocation11 + $0x18] sm:$0xff]
    %v682 = vld [vmem:[#allocation13] sm:$0x1]
    %v684 = vlaneseq
    %v685 = vshrl.u32 %v684, 7
    %v686 = vsub.s32 0, %v685
    %v687 = vrot.slane %v682, %v686
    %v690 = vsel %vm156, %v677, 0
    %692 = vmatprep.subr.mxu0 0.0
    %693 = vmatpush1.msra.mxu0 %v678
    %694 = vmatprep.subr.mxu0 0.0
    %695 = vmatpush1.msra.mxu0 %v679
    %696 = vmatprep.subr.mxu0 0.0
    %697 = vmatpush1.msra.mxu0 %v680
    %698 = vmatprep.subr.mxu0 0.0
    %699 = vmatpush1.msra.mxu0 %v681
    %700 = vmatprep.subr.mxu0 0.0
    %701 = vmatpush1.msra.mxu0 0.0
    %702 = vmatprep.subr.mxu0 0.0
    %703 = vmatpush1.msra.mxu0 0.0
    %704 = vmatprep.subr.mxu0 0.0
    %705 = vmatpush1.msra.mxu0 0.0
    %706 = vmatprep.subr.mxu0 0.0
    %707 = vmatpush1.msra.mxu0 0.0
    %708 = vmatprep.subr.mxu0 0.0
    %709 = vmatpush1.msra.mxu0 0.0
    %710 = vmatprep.subr.mxu0 0.0
    %711 = vmatpush1.msra.mxu0 0.0
    %712 = vmatprep.subr.mxu0 0.0
    %713 = vmatpush1.msra.mxu0 0.0
    %714 = vmatprep.subr.mxu0 0.0
    %715 = vmatpush1.msra.mxu0 0.0
    %716 = vmatprep.subr.mxu0 0.0
    %717 = vmatpush1.msra.mxu0 0.0
    %718 = vmatprep.subr.mxu0 0.0
    %719 = vmatpush1.msra.mxu0 0.0
    %720 = vmatprep.subr.mxu0 0.0
    %721 = vmatpush1.msra.mxu0 0.0
    %722 = vmatprep.subr.mxu0 0.0
    %723 = vmatpush1.msra.mxu0 0.0
    %724 = vmatprep.subr.mxu0 0.0
    %725 = vmatpush1.msra.mxu0 0.0
    %726 = vmatprep.subr.mxu0 0.0
    %727 = vmatpush1.msra.mxu0 0.0
    %728 = vmatprep.subr.mxu0 0.0
    %729 = vmatpush1.msra.mxu0 0.0
    %730 = vmatprep.subr.mxu0 0.0
    %731 = vmatpush1.msra.mxu0 0.0
    %732 = vmatprep.subr.mxu0 0.0
    %733 = vmatpush1.msra.mxu0 0.0
    %734 = vmatprep.subr.mxu0 0.0
    %735 = vmatpush1.msra.mxu0 0.0
    %736 = vmatprep.subr.mxu0 0.0
    %737 = vmatpush1.msra.mxu0 0.0
    %738 = vmatprep.subr.mxu0 0.0
    %739 = vmatpush1.msra.mxu0 0.0
    %740 = vmatprep.subr.mxu0 0.0
    %741 = vmatpush1.msra.mxu0 0.0
    %742 = vmatprep.subr.mxu0 0.0
    %743 = vmatpush1.msra.mxu0 0.0
    %744 = vmatprep.subr.mxu0 0.0
    %745 = vmatpush1.msra.mxu0 0.0
    %746 = vmatprep.subr.mxu0 0.0
    %747 = vmatpush1.msra.mxu0 0.0
    %748 = vmatprep.subr.mxu0 0.0
    %749 = vmatpush1.msra.mxu0 0.0
    %750 = vmatprep.subr.mxu0 0.0
    %751 = vmatpush1.msra.mxu0 0.0
    %752 = vmatprep.subr.mxu0 0.0
    %753 = vmatpush1.msra.mxu0 0.0
    %754 = vmatprep.subr.mxu0 0.0
    %755 = vmatpush1.msra.mxu0 0.0
    %756 = vmatprep.mubr.f32.mxu0 0.0
    %757 = vmatmul.mubr.f32.gmra.mrb[0].mxu0 %v690
    %v758 = vpop.f32.mrb[0].mxu0
    %v759 = vadd.f32 %v687, %v758
    %v760 = vpop.f32.mrb[0].mxu0
    %761 = vdwg.mxu0
    %762 = vst [vmem:[#allocation14] sm:$0xff] %v759
    %763 = vrot.lane.b32.xlu0 %v677, 32
    %v764 = vpop.permute.xlu0 %763
    %767 = vrot.lane.b32.xlu0 %v403, 64
    %v768 = vpop.permute.xlu0 %767
    %771 = vrot.lane.b32.xlu0 %v669, 96
    %v772 = vpop.permute.xlu0 %771
    %v774 = vsel %vm156, %v411, %v764
    %vm775 = vcmask 523264
    %v776 = vsel %vm775, %v774, %v768
    %vm777 = vcmask 785408
    %v778 = vsel %vm777, %v776, %v772
    %779 = vst [vmem:[%s9] sm:$0xff] %v778
    // Predicated region
    $region58: #{decoder_forward.1} parent=1 // pred_check
      _
    $region59: #{decoder_forward.1} parent=1 // pred_check_branch
      %781 = sbr.rel (0) target = $region61
    $region60: #{decoder_forward.1} parent=1 // pred_region
      %s783 = ssub.s32 128, 128
      %784 = vsyncadd [#allocation5], %s783
      %s786 = sshll.u32 [#allocation14], 4
      %s787 = int_to_ptr.vmem [resolvable:$true] %s786
      %789 = dma.vmem_to_hbm [thread:$0]  %s787, 128, %s8, [#allocation5]
    $region61: #{decoder_forward.1} parent=1 // pred_fallthru
      _
    // Predicated region
    $region62: #{decoder_forward.1} parent=1 // pred_check
      _
    $region63: #{decoder_forward.1} parent=1 // pred_check_branch
      %791 = sbr.rel (0) target = $region65
    $region64: #{decoder_forward.1} parent=1 // pred_region
      _
    $region65: #{decoder_forward.1} parent=1 // pred_fallthru
      _
    // Predicated region
    $region66: #{decoder_forward.1} parent=1 // pred_check
      _
    $region67: #{decoder_forward.1} parent=1 // pred_check_branch
      %793 = sbr.rel (0) target = $region69
    $region68: #{decoder_forward.1} parent=1 // pred_region
      %794 = dma.done [#allocation5], 128
    $region69: #{decoder_forward.1} parent=1 // pred_fallthru
      _
    // Predicated region
    $region70: #{decoder_forward.1} parent=1 // pred_check
      _
    $region71: #{decoder_forward.1} parent=1 // pred_check_branch
      %796 = sbr.rel (0) target = $region73
    $region72: #{decoder_forward.1} parent=1 // pred_region
      _
    $region73: #{decoder_forward.1} parent=1 // pred_fallthru
      _
    %797 = vsyncpa [#allocation4], 1
    %798 = vsyncpa [#allocation9], 1
    %799 = vsyncpa [#allocation12], 1
    %800 = vsyncpa [#allocation5], 1
    %801 = vsyncpa [#allocation6], 1

</llo_original>
